<compile_context>
chip_gen: v5e
topology: v5e:2x2
jax: 0.10.0
libtpu: 0.0.40
codegen_flags: <defaults>
</compile_context>

<pallas_src>
import jax
import jax.numpy as jnp
from jax.experimental import pallas as pl
from jax.experimental.pallas import tpu as pltpu

_LANE = 128
_SUBLANE = 8


def _round_up(n, m):
    return (n + m - 1) // m * m


def _pad2(a, rows, cols):
    return jnp.pad(a, ((0, rows - a.shape[0]), (0, cols - a.shape[1])))


def mynet_kernel(x_ref, w1_ref, b1_ref, w2_ref, b2_ref, cmask_ref, cct_ref,
                 out_ref):
    # x    : (TB, K)   f32   (K unpadded; bf16 cast happens here, not in HBM)
    # w1   : (K,  Hp)  bf16      b1 : (1, Hp) f32
    # w2   : (Hp, Cp)  bf16      b2 : (1, Cp) f32
    # cmask: (1,  Cp)  f32   additive mask: 0 on real cluster lanes, -1e30 on pad
    # cct  : (OS, Cp)  bf16  cluster centers, transposed + sublane-padded (OS=8)
    # out  : (OS, TB)  f32   transposed output: batch on the 128-lane axis
    x = x_ref[...].astype(jnp.bfloat16)

    # Linear(input_size, H) + ReLU  (bf16 operands, f32 accumulation on MXU).
    h = jnp.dot(x, w1_ref[...], preferred_element_type=jnp.float32) + b1_ref[...]
    h = jnp.maximum(h, 0.0)

    # Linear(H, C) + ReLU, then mask padded cluster lanes. The mask is added
    # AFTER the ReLU so the -1e30 cannot be clamped to 0 and leak into softmax.
    z = jnp.dot(h.astype(jnp.bfloat16), w2_ref[...],
                preferred_element_type=jnp.float32) + b2_ref[...]
    z = jnp.maximum(z, 0.0) + cmask_ref[...]

    # Softmax over clusters (nn.Softmax() on 2-D input -> dim=1); the
    # reciprocal runs on the EUP slot (free next to the MXU/VPU work).
    m = jnp.max(z, axis=-1, keepdims=True)
    e = jnp.exp(z - m)
    p = e * pl.reciprocal(jnp.sum(e, axis=-1, keepdims=True), approx=True)

    # compute_centroids, transposed: out[o, b] = sum_c cct[o, c] * p[b, c].
    # Emitting (OS, TB) keeps the store lane-dense while writing 16x fewer
    # bytes than the old (TB, 128)-padded f32 block.
    out_ref[...] = jax.lax.dot_general(
        cct_ref[...], p.astype(jnp.bfloat16),
        dimension_numbers=(((1,), (1,)), ((), ())),
        preferred_element_type=jnp.float32)


def prepare_params(w1, b1, w2, b2, cluster_centers):
    """Pad/cast the parameters ONCE (outside the per-call wrapper) and reuse.

    w1:(K,H) b1:(1,H) w2:(H,C) b2:(1,C) cc:(C,2)  ->  dict of device arrays.
    """
    K, H = w1.shape
    C = w2.shape[1]
    O = cluster_centers.shape[1]
    Hp = _round_up(H, _LANE)
    Cp = _round_up(C, _LANE)
    OS = _round_up(O, _SUBLANE)
    cmask = jnp.where(jnp.arange(Cp) < C, 0.0, -1e30).astype(jnp.float32)
    return dict(
        w1=_pad2(w1, K, Hp).astype(jnp.bfloat16),            # K stays unpadded
        b1=_pad2(b1, 1, Hp).astype(jnp.float32),
        b2=_pad2(b2, 1, Cp).astype(jnp.float32),
        w2=_pad2(w2, Hp, Cp).astype(jnp.bfloat16),
        cmask=cmask[None, :],                                 # (1, Cp)
        cct=_pad2(cluster_centers.T, OS, Cp).astype(jnp.bfloat16),  # (OS, Cp)
        K=K, O=O,
    )


def _choose_tile(batch, tile_b):
    """Pick the batch tile.

    Tiny batches (<=128 rows) use one full-extent block. Larger batches use
    multiple-of-128 tiles and aim for >=2 grid steps so dimension_semantics
    ("parallel",) can split the grid across both v7x TensorCores.
    """
    bs = _round_up(batch, _SUBLANE)
    if bs <= _LANE:
        return bs, bs                                  # single step, full block
    half = _round_up(pl.cdiv(bs, 2), _LANE)
    tb = max(_LANE, min(_round_up(tile_b, _LANE), half))
    return tb, _round_up(bs, tb)


def mynet_forward(x, params, *, tile_b=256):
    """x: (B, K) f32 activations (embeddings ++ trajectory) -> (B, 2) f32."""
    B, K = x.shape
    assert K == params["K"], (K, params["K"])
    O = params["O"]
    w1, b1, w2, b2 = params["w1"], params["b1"], params["w2"], params["b2"]
    cmask, cct = params["cmask"], params["cct"]
    Hp, Cp, OS = w1.shape[1], w2.shape[1], cct.shape[0]

    TB, Bp = _choose_tile(B, tile_b)
    if Bp != B:
        # Batch rows only; K stays unpadded and x is not copied for the cast.
        x = jnp.pad(x, ((0, Bp - B), (0, 0)))

    out_t = pl.pallas_call(
        mynet_kernel,
        out_shape=jax.ShapeDtypeStruct((OS, Bp), jnp.float32),
        grid=(Bp // TB,),
        in_specs=[
            pl.BlockSpec((TB, K), lambda i: (i, 0)),    # x: streamed over batch
            pl.BlockSpec((K, Hp), lambda i: (0, 0)),    # w1: VMEM-resident
            pl.BlockSpec((1, Hp), lambda i: (0, 0)),    # b1
            pl.BlockSpec((Hp, Cp), lambda i: (0, 0)),   # w2
            pl.BlockSpec((1, Cp), lambda i: (0, 0)),    # b2
            pl.BlockSpec((1, Cp), lambda i: (0, 0)),    # cluster-lane mask
            pl.BlockSpec((OS, Cp), lambda i: (0, 0)),   # cluster centers^T
        ],
        out_specs=pl.BlockSpec((OS, TB), lambda i: (0, i)),
        compiler_params=pltpu.CompilerParams(
            dimension_semantics=("parallel",),          # megacore split on v7x
        ),
    )(x, w1, b1, w2, b2, cmask, cct)

    # Un-transpose and drop padding (tiny (O, B) -> (B, O) in plain JAX).
    return out_t[:O, :B].T


def renorm_max_norm1(table):
    """Pre-apply nn.Embedding(max_norm=1): rows with L2 norm > 1 rescaled to 1.

    Applied once offline; equivalent to PyTorch's on-access renorm at inference.
    """
    norm = jnp.sqrt(jnp.sum(table * table, axis=-1, keepdims=True))
    return table * jnp.where(norm > 1.0, 1.0 / norm, 1.0)


def reference_forward(x, w1, b1, w2, b2, cc):
    """Pure-JAX reference matching the kernel's bf16 operand rounding."""
    bf = lambda a: a.astype(jnp.bfloat16).astype(jnp.float32)
    h = jnp.maximum(jnp.dot(bf(x), bf(w1)) + b1, 0.0)
    z = jnp.maximum(jnp.dot(bf(h), bf(w2)) + b2, 0.0)
    p = jax.nn.softmax(z, axis=-1)
    return jnp.dot(bf(p), bf(cc))


if __name__ == "__main__":
    key = jax.random.PRNGKey(0)

    # Small, shape-consistent configuration (real model: hidden=500, ~3400
    # clusters -> re-check TB against v7x's 64 MiB VMEM when scaling up).
    B = 256                    # batch (2 "parallel" grid steps at TB=128)
    k = 5                      # 2k trajectory points kept -> traj has 4k columns
    hidden = 64                # hidden_layer_size stand-in (pads to 128 lanes)
    num_clusters = 32          # rows of cluster_centers (pads to 128 lanes)
    emb_dims = [10] * 6        # one embedding dim per metadata feature
    # synthetic vocab sizes (origin_call, origin_stand, taxi_id, week, day, quart_hour)
    counts = (100, 64, 448, 52, 7, 96)
    input_size = sum(emb_dims) + 4 * k   # 60 + 20 = 80

    keys = jax.random.split(key, 14)

    # Embedding tables, max_norm=1 clamp applied once up front.
    tables = [
        renorm_max_norm1(
            jax.random.normal(keys[i], (counts[i], emb_dims[i]), jnp.float32))
        for i in range(6)
    ]

    # MLP parameters. PyTorch Linear computes x @ W.T + b with W: (out, in);
    # here we store the already-transposed (in, out) matrices.
    w1 = jax.random.normal(keys[6], (input_size, hidden), jnp.float32) * 0.1
    b1 = jax.random.normal(keys[7], (1, hidden), jnp.float32) * 0.1
    w2 = jax.random.normal(keys[8], (hidden, num_clusters), jnp.float32) * 0.1
    b2 = jax.random.normal(keys[9], (1, num_clusters), jnp.float32) * 0.1
    cluster_centers = jax.random.normal(keys[10], (num_clusters, 2), jnp.float32)

    # Pad/cast the parameters ONCE (kept on device, reused every forward call).
    params = prepare_params(w1, b1, w2, b2, cluster_centers)

    # Inputs: integer metadata columns and trajectory coordinates.
    meta = jnp.stack(
        [
            jax.random.randint(jax.random.fold_in(keys[11], i), (B,), 0, counts[i])
            for i in range(6)
        ],
        axis=1,
    )  # (B, 6) int32
    traj = jax.random.normal(keys[12], (B, 4 * k), jnp.float32)  # (B, 20)

    # Glue: embed_metadata + concat with traj (gathers done in plain JAX).
    embeds = [jnp.take(tables[i], meta[:, i], axis=0) for i in range(6)]
    x = jnp.concatenate(embeds + [traj], axis=1).astype(jnp.float32)  # (B, 80)

    # Hot path in the Pallas kernel.
    out = mynet_forward(x, params, tile_b=256)  # (B, 2)
    jax.block_until_ready(out)

    # Sanity check against a pure-JAX reference with matching bf16 rounding.
    ref = reference_forward(x, w1, b1, w2, b2, cluster_centers)
    assert out.shape == (B, 2)
    assert jnp.allclose(out, ref, atol=1e-2, rtol=1e-2), (
        "mismatch vs reference: max abs diff = "
        f"{float(jnp.max(jnp.abs(out - ref)))}")

    print("KERNEL_OK")
</pallas_src>

<mosaic_0001>
module attributes {stable_mosaic.version = 11 : i64} {
  func.func @mynet_kernel(%arg0: i32, %arg1: memref<128x80xf32, #tpu.memory_space<vmem>>, %arg2: memref<80x128xbf16, #tpu.memory_space<vmem>>, %arg3: memref<1x128xf32, #tpu.memory_space<vmem>>, %arg4: memref<128x128xbf16, #tpu.memory_space<vmem>>, %arg5: memref<1x128xf32, #tpu.memory_space<vmem>>, %arg6: memref<1x128xf32, #tpu.memory_space<vmem>>, %arg7: memref<8x128xbf16, #tpu.memory_space<vmem>>, %arg8: memref<8x128xf32, #tpu.memory_space<vmem>>) attributes {dimension_semantics = [#tpu.dimension_semantics<parallel>], iteration_bounds = array<i64: 2>, scalar_prefetch = 0 : i64, scratch_operands = 0 : i64, tpu.core_type = #tpu.core_type<tc>, window_params = [{transform_indices = @transform_0, window_bounds = array<i64: 128, 80>}, {pipeline_mode = #tpu.pipeline_mode<synchronous>, transform_indices = @transform_1, window_bounds = array<i64: 80, 128>}, {pipeline_mode = #tpu.pipeline_mode<synchronous>, transform_indices = @transform_2, window_bounds = array<i64: 1, 128>}, {pipeline_mode = #tpu.pipeline_mode<synchronous>, transform_indices = @transform_3, window_bounds = array<i64: 128, 128>}, {pipeline_mode = #tpu.pipeline_mode<synchronous>, transform_indices = @transform_4, window_bounds = array<i64: 1, 128>}, {pipeline_mode = #tpu.pipeline_mode<synchronous>, transform_indices = @transform_5, window_bounds = array<i64: 1, 128>}, {pipeline_mode = #tpu.pipeline_mode<synchronous>, transform_indices = @transform_6, window_bounds = array<i64: 8, 128>}, {transform_indices = @transform_7, window_bounds = array<i64: 8, 128>}]} {
    %c0 = arith.constant 0 : index
    %c0_0 = arith.constant 0 : index
    %0 = vector.load %arg1[%c0, %c0_0] : memref<128x80xf32, #tpu.memory_space<vmem>>, vector<128x80xf32>
    %1 = arith.truncf %0 : vector<128x80xf32> to vector<128x80xbf16>
    %c0_1 = arith.constant 0 : index
    %c0_2 = arith.constant 0 : index
    %2 = vector.load %arg2[%c0_1, %c0_2] : memref<80x128xbf16, #tpu.memory_space<vmem>>, vector<80x128xbf16>
    %cst = arith.constant dense<0.000000e+00> : vector<128x128xf32>
    %3 = tpu.matmul %1, %2, %cst {dimension_numbers = #tpu.dot_dimension_numbers<[1], [0], [0], [1], [0, 0, 1, 1], [], []>} : vector<128x80xbf16>, vector<80x128xbf16>, vector<128x128xf32> -> vector<128x128xf32>
    %c0_3 = arith.constant 0 : index
    %c0_4 = arith.constant 0 : index
    %4 = vector.load %arg3[%c0_3, %c0_4] : memref<1x128xf32, #tpu.memory_space<vmem>>, vector<1x128xf32>
    %5 = vector.broadcast %4 : vector<1x128xf32> to vector<128x128xf32>
    %6 = arith.addf %3, %5 : vector<128x128xf32>
    %cst_5 = arith.constant 0.000000e+00 : f32
    %7 = vector.broadcast %cst_5 : f32 to vector<128x128xf32>
    %8 = arith.maximumf %6, %7 : vector<128x128xf32>
    %9 = arith.truncf %8 : vector<128x128xf32> to vector<128x128xbf16>
    %c0_6 = arith.constant 0 : index
    %c0_7 = arith.constant 0 : index
    %10 = vector.load %arg4[%c0_6, %c0_7] : memref<128x128xbf16, #tpu.memory_space<vmem>>, vector<128x128xbf16>
    %cst_8 = arith.constant dense<0.000000e+00> : vector<128x128xf32>
    %11 = tpu.matmul %9, %10, %cst_8 {dimension_numbers = #tpu.dot_dimension_numbers<[1], [0], [0], [1], [0, 0, 1, 1], [], []>} : vector<128x128xbf16>, vector<128x128xbf16>, vector<128x128xf32> -> vector<128x128xf32>
    %c0_9 = arith.constant 0 : index
    %c0_10 = arith.constant 0 : index
    %12 = vector.load %arg5[%c0_9, %c0_10] : memref<1x128xf32, #tpu.memory_space<vmem>>, vector<1x128xf32>
    %13 = vector.broadcast %12 : vector<1x128xf32> to vector<128x128xf32>
    %14 = arith.addf %11, %13 : vector<128x128xf32>
    %cst_11 = arith.constant 0.000000e+00 : f32
    %15 = vector.broadcast %cst_11 : f32 to vector<128x128xf32>
    %16 = arith.maximumf %14, %15 : vector<128x128xf32>
    %c0_12 = arith.constant 0 : index
    %c0_13 = arith.constant 0 : index
    %17 = vector.load %arg6[%c0_12, %c0_13] : memref<1x128xf32, #tpu.memory_space<vmem>>, vector<1x128xf32>
    %18 = vector.broadcast %17 : vector<1x128xf32> to vector<128x128xf32>
    %19 = arith.addf %16, %18 : vector<128x128xf32>
    %cst_14 = arith.constant dense<0xFF800000> : vector<128xf32>
    %20 = vector.multi_reduction <maximumf>, %19, %cst_14 [1] : vector<128x128xf32> to vector<128xf32>
    %21 = vector.shape_cast %20 : vector<128xf32> to vector<128x1xf32>
    %22 = vector.broadcast %21 : vector<128x1xf32> to vector<128x128xf32>
    %23 = arith.subf %19, %22 : vector<128x128xf32>
    %24 = math.exp %23 : vector<128x128xf32>
    %cst_15 = arith.constant dense<0.000000e+00> : vector<128xf32>
    %25 = vector.multi_reduction <add>, %24, %cst_15 [1] : vector<128x128xf32> to vector<128xf32>
    %26 = vector.shape_cast %25 : vector<128xf32> to vector<128x1xf32>
    %27 = tpu.reciprocal %26 {approx = true} : vector<128x1xf32> -> vector<128x1xf32>
    %28 = vector.broadcast %27 : vector<128x1xf32> to vector<128x128xf32>
    %29 = arith.mulf %24, %28 : vector<128x128xf32>
    %c0_16 = arith.constant 0 : index
    %c0_17 = arith.constant 0 : index
    %30 = vector.load %arg7[%c0_16, %c0_17] : memref<8x128xbf16, #tpu.memory_space<vmem>>, vector<8x128xbf16>
    %31 = arith.truncf %29 : vector<128x128xf32> to vector<128x128xbf16>
    %cst_18 = arith.constant dense<0.000000e+00> : vector<8x128xf32>
    %32 = tpu.matmul %30, %31, %cst_18 {dimension_numbers = #tpu.dot_dimension_numbers<[1], [1], [0], [0], [0, 0, 1, 0], [], []>} : vector<8x128xbf16>, vector<128x128xbf16>, vector<8x128xf32> -> vector<8x128xf32>
    %c0_19 = arith.constant 0 : index
    %c0_20 = arith.constant 0 : index
    %33 = vector.load %arg8[%c0_19, %c0_20] : memref<8x128xf32, #tpu.memory_space<vmem>>, vector<8x128xf32>
    tpu.vector_store %arg8[%c0_19, %c0_20], %32 {strides = array<i32>} : memref<8x128xf32, #tpu.memory_space<vmem>>, vector<8x128xf32>,
    return
  }
  func.func @transform_0(%arg0: i32) -> (i32, i32) {
    %c0_i32 = arith.constant 0 : i32
    %c0_i32_0 = arith.constant 0 : i32
    return %arg0, %c0_i32 : i32, i32
  }
  func.func @transform_1(%arg0: i32) -> (i32, i32) {
    %c0_i32 = arith.constant 0 : i32
    %c0_i32_0 = arith.constant 0 : i32
    %c0_i32_1 = arith.constant 0 : i32
    return %c0_i32, %c0_i32_0 : i32, i32
  }
  func.func @transform_2(%arg0: i32) -> (i32, i32) {
    %c0_i32 = arith.constant 0 : i32
    %c0_i32_0 = arith.constant 0 : i32
    %c0_i32_1 = arith.constant 0 : i32
    return %c0_i32, %c0_i32_0 : i32, i32
  }
  func.func @transform_3(%arg0: i32) -> (i32, i32) {
    %c0_i32 = arith.constant 0 : i32
    %c0_i32_0 = arith.constant 0 : i32
    %c0_i32_1 = arith.constant 0 : i32
    return %c0_i32, %c0_i32_0 : i32, i32
  }
  func.func @transform_4(%arg0: i32) -> (i32, i32) {
    %c0_i32 = arith.constant 0 : i32
    %c0_i32_0 = arith.constant 0 : i32
    %c0_i32_1 = arith.constant 0 : i32
    return %c0_i32, %c0_i32_0 : i32, i32
  }
  func.func @transform_5(%arg0: i32) -> (i32, i32) {
    %c0_i32 = arith.constant 0 : i32
    %c0_i32_0 = arith.constant 0 : i32
    %c0_i32_1 = arith.constant 0 : i32
    return %c0_i32, %c0_i32_0 : i32, i32
  }
  func.func @transform_6(%arg0: i32) -> (i32, i32) {
    %c0_i32 = arith.constant 0 : i32
    %c0_i32_0 = arith.constant 0 : i32
    %c0_i32_1 = arith.constant 0 : i32
    return %c0_i32, %c0_i32_0 : i32, i32
  }
  func.func @transform_7(%arg0: i32) -> (i32, i32) {
    %c0_i32 = arith.constant 0 : i32
    %c0_i32_0 = arith.constant 0 : i32
    return %c0_i32, %arg0 : i32, i32
  }
}

</mosaic_0001>

<llo_original>
// kernel: tpu_custom_call.1
$region0: #{tpu_custom_call.1}
  #allocation0 [shape = 'u32[]', space=smem, size = 0x4, offset = 0x4, fixed_abs, tag = 'smem constant byte address 0x4 - core index']
  #allocation1 [shape = 'u32[72,128]{1,0:T(1,128)}', space=vmem, size = 0x9000, scoped, tag = 'internal scratch']
  %s0 = inlined_call_operand.vmem [shape: f32[256,80], index: 0, kind: input, shape index: {}]
  %s1 = inlined_call_operand.vmem [shape: bf16[80,128], index: 1, kind: input, shape index: {}]
  %s2 = inlined_call_operand.vmem [shape: f32[1,128], index: 2, kind: input, shape index: {}]
  %s3 = inlined_call_operand.vmem [shape: bf16[128,128], index: 3, kind: input, shape index: {}]
  %s4 = inlined_call_operand.vmem [shape: f32[1,128], index: 4, kind: input, shape index: {}]
  %s5 = inlined_call_operand.vmem [shape: f32[1,128], index: 5, kind: input, shape index: {}]
  %s6 = inlined_call_operand.vmem [shape: bf16[8,128], index: 6, kind: input, shape index: {}]
  %s7 = inlined_call_operand.hbm [shape: f32[8,256], index: 7, kind: output, shape index: {}]
  %s8 = sld [smem:[#allocation0]]
  $region61: #{tpu_custom_call.1} parent=0
    _
  %s10 = ssub.s32 1, %s8
  %s11 = scalar_select 0, %s10, %s8
  $region1: #{tpu_custom_call.1} parent=0
    #allocation2 [shape = 'u8[8192]{0}', space=vmem, size = 0x2000, scoped, tag = 'output window, operand 0']
    #allocation3 [shape = 's32[2]{0}', space=sflag, size = 0x8, scoped, tag = 'scoped memory for tpu_custom_call.1']
    %12 = vsyncpa [#allocation3], 0
    %s13 = scalar_lea.sflag [#allocation3], 1
    %14 = vsyncpa %s13, 0
    loop: start=0, step=1, limit=4
    $region2: #{tpu_custom_call.1} parent=1 // loop_pre_header
      _
    $region3: #{tpu_custom_call.1} parent=1 // loop_header
      %s16 = sphi 0, %s20
      %p17 = scmp.ge.s32.totalorder %s16, 4
      %s26 = sphi 0, %s28
      %s29 = sphi 0, %s26
      %s30 = sphi 0, %s29
      %s46 = sphi 0, %s30
      %s50 = sphi 0, %s50
      %s52 = sphi 0, %s50
      %s53 = sphi 0, %s52
      %s67 = sphi 0, %s53
      %s71 = sphi 0, %s71
      %s73 = sphi 0, %s71
      %s74 = sphi 0, %s73
      %s88 = sphi 0, %s74
      %s92 = sphi 0, %s92
      %s94 = sphi 0, %s92
      %s95 = sphi 0, %s94
      %s109 = sphi 0, %s95
      %s113 = sphi 0, %s113
      %s115 = sphi 0, %s113
      %s116 = sphi 0, %s115
      %s130 = sphi 0, %s116
      %s134 = sphi 0, %s134
      %s136 = sphi 0, %s134
      %s137 = sphi 0, %s136
      %s151 = sphi 0, %s137
      %s155 = sphi 0, %s155
      %s157 = sphi 0, %s155
      %s158 = sphi 0, %s157
      %s172 = sphi 0, %s158
      %s178 = sphi 0, %s180
      %s181 = sphi 0, %s178
      %s182 = sphi 0, %s181
      %s198 = sphi 0, %s182
    $region4: #{tpu_custom_call.1} parent=1 // loop_header_branch
      %19 = sbr.rel (%p17) target = $region8
    $region5: #{tpu_custom_call.1} parent=1 // loop_body
      %s21 = ssub.s32 %s16, 1
      %s22 = ssub.s32 %s16, 2
      %s23 = sadd.s32 %s16, 1
      %s24 = ssub.s32 %s16, %s23
      %p25 = scmp.eq.s32.totalorder %s24, 0
      %s27 = sadd.s32 %s26, 1
      %s28 = scalar_select %p25, %s26, %s27
      %p31 = pneg %p25
      %p32 = scmp.eq.s32.totalorder %s16, 1
      %p33 = por %p31, %p32
      %p34 = scmp.ne.s32.totalorder %s26, %s29
      %p35 = scmp.eq.s32.totalorder %s16, 0
      %p36 = por %p34, %p35
      %p37 = scmp.ne.s32.totalorder %s26, %s29
      %p38 = scmp.eq.s32.totalorder %s21, 1
      %p39 = por %p37, %p38
      %p40 = scmp.ne.s32.totalorder %s29, %s30
      %p41 = scmp.eq.s32.totalorder %s21, 0
      %p42 = por %p40, %p41
      %p43 = scmp.ne.s32.totalorder %s29, %s30
      %p44 = scmp.eq.s32.totalorder %s22, 1
      %p45 = por %p43, %p44
      %p47 = scmp.ne.s32.totalorder %s30, %s46
      %p48 = scmp.eq.s32.totalorder %s22, 0
      %p49 = por %p47, %p48
      %s51 = sadd.s32 %s50, 1
      %p54 = scmp.eq.s32.totalorder %s16, 1
      %p55 = scmp.ne.s32.totalorder %s50, %s52
      %p56 = scmp.eq.s32.totalorder %s16, 0
      %p57 = por %p55, %p56
      %p58 = scmp.ne.s32.totalorder %s50, %s52
      %p59 = scmp.eq.s32.totalorder %s21, 1
      %p60 = por %p58, %p59
      %p61 = scmp.ne.s32.totalorder %s52, %s53
      %p62 = scmp.eq.s32.totalorder %s21, 0
      %p63 = por %p61, %p62
      %p64 = scmp.ne.s32.totalorder %s52, %s53
      %p65 = scmp.eq.s32.totalorder %s22, 1
      %p66 = por %p64, %p65
      %p68 = scmp.ne.s32.totalorder %s53, %s67
      %p69 = scmp.eq.s32.totalorder %s22, 0
      %p70 = por %p68, %p69
      %s72 = sadd.s32 %s71, 1
      %p75 = scmp.eq.s32.totalorder %s16, 1
      %p76 = scmp.ne.s32.totalorder %s71, %s73
      %p77 = scmp.eq.s32.totalorder %s16, 0
      %p78 = por %p76, %p77
      %p79 = scmp.ne.s32.totalorder %s71, %s73
      %p80 = scmp.eq.s32.totalorder %s21, 1
      %p81 = por %p79, %p80
      %p82 = scmp.ne.s32.totalorder %s73, %s74
      %p83 = scmp.eq.s32.totalorder %s21, 0
      %p84 = por %p82, %p83
      %p85 = scmp.ne.s32.totalorder %s73, %s74
      %p86 = scmp.eq.s32.totalorder %s22, 1
      %p87 = por %p85, %p86
      %p89 = scmp.ne.s32.totalorder %s74, %s88
      %p90 = scmp.eq.s32.totalorder %s22, 0
      %p91 = por %p89, %p90
      %s93 = sadd.s32 %s92, 1
      %p96 = scmp.eq.s32.totalorder %s16, 1
      %p97 = scmp.ne.s32.totalorder %s92, %s94
      %p98 = scmp.eq.s32.totalorder %s16, 0
      %p99 = por %p97, %p98
      %p100 = scmp.ne.s32.totalorder %s92, %s94
      %p101 = scmp.eq.s32.totalorder %s21, 1
      %p102 = por %p100, %p101
      %p103 = scmp.ne.s32.totalorder %s94, %s95
      %p104 = scmp.eq.s32.totalorder %s21, 0
      %p105 = por %p103, %p104
      %p106 = scmp.ne.s32.totalorder %s94, %s95
      %p107 = scmp.eq.s32.totalorder %s22, 1
      %p108 = por %p106, %p107
      %p110 = scmp.ne.s32.totalorder %s95, %s109
      %p111 = scmp.eq.s32.totalorder %s22, 0
      %p112 = por %p110, %p111
      %s114 = sadd.s32 %s113, 1
      %p117 = scmp.eq.s32.totalorder %s16, 1
      %p118 = scmp.ne.s32.totalorder %s113, %s115
      %p119 = scmp.eq.s32.totalorder %s16, 0
      %p120 = por %p118, %p119
      %p121 = scmp.ne.s32.totalorder %s113, %s115
      %p122 = scmp.eq.s32.totalorder %s21, 1
      %p123 = por %p121, %p122
      %p124 = scmp.ne.s32.totalorder %s115, %s116
      %p125 = scmp.eq.s32.totalorder %s21, 0
      %p126 = por %p124, %p125
      %p127 = scmp.ne.s32.totalorder %s115, %s116
      %p128 = scmp.eq.s32.totalorder %s22, 1
      %p129 = por %p127, %p128
      %p131 = scmp.ne.s32.totalorder %s116, %s130
      %p132 = scmp.eq.s32.totalorder %s22, 0
      %p133 = por %p131, %p132
      %s135 = sadd.s32 %s134, 1
      %p138 = scmp.eq.s32.totalorder %s16, 1
      %p139 = scmp.ne.s32.totalorder %s134, %s136
      %p140 = scmp.eq.s32.totalorder %s16, 0
      %p141 = por %p139, %p140
      %p142 = scmp.ne.s32.totalorder %s134, %s136
      %p143 = scmp.eq.s32.totalorder %s21, 1
      %p144 = por %p142, %p143
      %p145 = scmp.ne.s32.totalorder %s136, %s137
      %p146 = scmp.eq.s32.totalorder %s21, 0
      %p147 = por %p145, %p146
      %p148 = scmp.ne.s32.totalorder %s136, %s137
      %p149 = scmp.eq.s32.totalorder %s22, 1
      %p150 = por %p148, %p149
      %p152 = scmp.ne.s32.totalorder %s137, %s151
      %p153 = scmp.eq.s32.totalorder %s22, 0
      %p154 = por %p152, %p153
      %s156 = sadd.s32 %s155, 1
      %p159 = scmp.eq.s32.totalorder %s16, 1
      %p160 = scmp.ne.s32.totalorder %s155, %s157
      %p161 = scmp.eq.s32.totalorder %s16, 0
      %p162 = por %p160, %p161
      %p163 = scmp.ne.s32.totalorder %s155, %s157
      %p164 = scmp.eq.s32.totalorder %s21, 1
      %p165 = por %p163, %p164
      %p166 = scmp.ne.s32.totalorder %s157, %s158
      %p167 = scmp.eq.s32.totalorder %s21, 0
      %p168 = por %p166, %p167
      %p169 = scmp.ne.s32.totalorder %s157, %s158
      %p170 = scmp.eq.s32.totalorder %s22, 1
      %p171 = por %p169, %p170
      %p173 = scmp.ne.s32.totalorder %s158, %s172
      %p174 = scmp.eq.s32.totalorder %s22, 0
      %p175 = por %p173, %p174
      %s176 = ssub.s32 %s16, %s23
      %p177 = scmp.eq.s32.totalorder %s176, 0
      %s179 = sadd.s32 %s178, 1
      %s180 = scalar_select %p177, %s178, %s179
      %p183 = pneg %p177
      %p184 = scmp.eq.s32.totalorder %s16, 1
      %p185 = por %p183, %p184
      %p186 = scmp.ne.s32.totalorder %s178, %s181
      %p187 = scmp.eq.s32.totalorder %s16, 0
      %p188 = por %p186, %p187
      %p189 = scmp.ne.s32.totalorder %s178, %s181
      %p190 = scmp.eq.s32.totalorder %s21, 1
      %p191 = por %p189, %p190
      %p192 = scmp.ne.s32.totalorder %s181, %s182
      %p193 = scmp.eq.s32.totalorder %s21, 0
      %p194 = por %p192, %p193
      %p195 = scmp.ne.s32.totalorder %s181, %s182
      %p196 = scmp.eq.s32.totalorder %s22, 1
      %p197 = por %p195, %p196
      %p199 = scmp.ne.s32.totalorder %s182, %s198
      %p200 = scmp.eq.s32.totalorder %s22, 0
      %p201 = por %p199, %p200
      %p202 = scmp.le.s32.totalorder 1, %s16
      %p203 = scmp.lt.s32.totalorder %s16, 3
      %p204 = pnand %p202, %p203
      %p205 = pneg %p204
      // Predicated region
      $region9: #{tpu_custom_call.1} parent=5 // pred_check
        _
      $region10: #{tpu_custom_call.1} parent=5 // pred_check_branch
        %207 = sbr.rel (%p204) target = $region12
      $region11: #{tpu_custom_call.1} parent=5 // pred_region
        %s208 = ssub.s32 %s16, 1
        // Predicated region
        $region13: #{tpu_custom_call.1} parent=11 // pred_check
          %p209 = pneg %p63
        $region14: #{tpu_custom_call.1} parent=11 // pred_check_branch
          %211 = sbr.rel (%p209) target = $region16
        $region15: #{tpu_custom_call.1} parent=11 // pred_region
          _
        $region16: #{tpu_custom_call.1} parent=11 // pred_fallthru
          _
        // Predicated region
        $region17: #{tpu_custom_call.1} parent=11 // pred_check
          %p212 = pneg %p84
        $region18: #{tpu_custom_call.1} parent=11 // pred_check_branch
          %214 = sbr.rel (%p212) target = $region20
        $region19: #{tpu_custom_call.1} parent=11 // pred_region
          _
        $region20: #{tpu_custom_call.1} parent=11 // pred_fallthru
          _
        // Predicated region
        $region21: #{tpu_custom_call.1} parent=11 // pred_check
          %p215 = pneg %p105
        $region22: #{tpu_custom_call.1} parent=11 // pred_check_branch
          %217 = sbr.rel (%p215) target = $region24
        $region23: #{tpu_custom_call.1} parent=11 // pred_region
          _
        $region24: #{tpu_custom_call.1} parent=11 // pred_fallthru
          _
        // Predicated region
        $region25: #{tpu_custom_call.1} parent=11 // pred_check
          %p218 = pneg %p126
        $region26: #{tpu_custom_call.1} parent=11 // pred_check_branch
          %220 = sbr.rel (%p218) target = $region28
        $region27: #{tpu_custom_call.1} parent=11 // pred_region
          _
        $region28: #{tpu_custom_call.1} parent=11 // pred_fallthru
          _
        // Predicated region
        $region29: #{tpu_custom_call.1} parent=11 // pred_check
          %p221 = pneg %p147
        $region30: #{tpu_custom_call.1} parent=11 // pred_check_branch
          %223 = sbr.rel (%p221) target = $region32
        $region31: #{tpu_custom_call.1} parent=11 // pred_region
          _
        $region32: #{tpu_custom_call.1} parent=11 // pred_fallthru
          _
        // Predicated region
        $region33: #{tpu_custom_call.1} parent=11 // pred_check
          %p224 = pneg %p168
        $region34: #{tpu_custom_call.1} parent=11 // pred_check_branch
          %226 = sbr.rel (%p224) target = $region36
        $region35: #{tpu_custom_call.1} parent=11 // pred_region
          _
        $region36: #{tpu_custom_call.1} parent=11 // pred_fallthru
          _
      $region12: #{tpu_custom_call.1} parent=5 // pred_fallthru
        _
      %p227 = scmp.lt.s32.totalorder %s16, 2
      // Predicated region
      $region37: #{tpu_custom_call.1} parent=5 // pred_check
        %p228 = pneg %p227
      $region38: #{tpu_custom_call.1} parent=5 // pred_check_branch
        %230 = sbr.rel (%p228) target = $region40
      $region39: #{tpu_custom_call.1} parent=5 // pred_region
        // Predicated region
        $region41: #{tpu_custom_call.1} parent=39 // pred_check
          %p231 = pneg %p36
        $region42: #{tpu_custom_call.1} parent=39 // pred_check_branch
          %233 = sbr.rel (%p231) target = $region44
        $region43: #{tpu_custom_call.1} parent=39 // pred_region
          %s234 = smul.u32 16, %s16
          %p235 = scmp.lt.s32.totalorder %s234, 31
          %s236 = scalar_select %p235, %s234, 31
          %s237 = smul.addr %s236, 8
          %s238 = scalar_lea.vmem %s0, %s237
          %s239 = smul.u32 16, %s16
        $region44: #{tpu_custom_call.1} parent=39 // pred_fallthru
          _
      $region40: #{tpu_custom_call.1} parent=5 // pred_fallthru
        _
      %p240 = scmp.le.s32.totalorder 1, %s16
      %p241 = scmp.lt.s32.totalorder %s16, 3
      %p242 = pnand %p240, %p241
      %p243 = pneg %p242
      // Predicated region
      $region45: #{tpu_custom_call.1} parent=5 // pred_check
        _
      $region46: #{tpu_custom_call.1} parent=5 // pred_check_branch
        %245 = sbr.rel (%p242) target = $region48
      $region47: #{tpu_custom_call.1} parent=5 // pred_region
        %s246 = ssub.s32 %s16, 1
        %s247 = smul.u32 16, %s21
        %p248 = scmp.lt.s32.totalorder %s247, 31
        %s249 = scalar_select %p248, %s247, 31
        %s250 = smul.addr %s249, 8
        %s251 = scalar_lea.vmem %s0, %s250
        %p252 = pneg %p42
        %p253 = pneg %p39
        %p254 = pneg %p63
        %p255 = pneg %p60
        %p256 = pneg %p84
        %p257 = pneg %p81
        %p258 = pneg %p105
        %p259 = pneg %p102
        %p260 = pneg %p126
        %p261 = pneg %p123
        %p262 = pneg %p147
        %p263 = pneg %p144
        %p264 = pneg %p168
        %p265 = pneg %p165
        %p266 = pneg %p194
        %p267 = pneg %p191
        %s268 = sand.u32 %s181, 1
        %s269 = scalar_lea.sflag [#allocation3], %s268
        %s270 = sand.u32 %s181, 1
        %s271 = smul.addr %s270, 8
        %s272 = scalar_lea.vmem [#allocation2], %s271
        %s273 = smul.u32 16, %s21
        %p274 = scmp.lt.s32.totalorder %s273, 31
        %s275 = scalar_select %p274, %s273, 31
        %s276 = smul.addr %s275, 8
        %s277 = scalar_lea.vmem %s0, %s276
        %s278 = smul.u32 16, %s21
        %v280 = vld [vmem:[%s277] sm:$0xff]
        %v281 = vld [vmem:[%s277 + $0x8] sm:$0xff]
        %v282 = vld [vmem:[%s277 + $0x10] sm:$0xff]
        %v283 = vld [vmem:[%s277 + $0x18] sm:$0xff]
        %v284 = vld [vmem:[%s277 + $0x20] sm:$0xff]
        %v285 = vld [vmem:[%s277 + $0x28] sm:$0xff]
        %v286 = vld [vmem:[%s277 + $0x30] sm:$0xff]
        %v287 = vld [vmem:[%s277 + $0x38] sm:$0xff]
        %v288 = vld [vmem:[%s277 + $0x40] sm:$0xff]
        %v289 = vld [vmem:[%s277 + $0x48] sm:$0xff]
        %v290 = vld [vmem:[%s277 + $0x50] sm:$0xff]
        %v291 = vld [vmem:[%s277 + $0x58] sm:$0xff]
        %v292 = vld [vmem:[%s277 + $0x60] sm:$0xff]
        %v293 = vld [vmem:[%s277 + $0x68] sm:$0xff]
        %v294 = vld [vmem:[%s277 + $0x70] sm:$0xff]
        %v295 = vld [vmem:[%s277 + $0x78] sm:$0xff]
        %v296 = vpack.c.bf16 %v281, %v280
        %v297 = vpack.c.bf16 %v283, %v282
        %v298 = vpack.c.bf16 %v285, %v284
        %v299 = vpack.c.bf16 %v287, %v286
        %v300 = vpack.c.bf16 %v289, %v288
        %v301 = vpack.c.bf16 %v291, %v290
        %v302 = vpack.c.bf16 %v293, %v292
        %v303 = vpack.c.bf16 %v295, %v294
        %v304 = vld [vmem:[%s1] sm:$0xf]
        %v305 = vld [vmem:[%s1 + $0x4] sm:$0xf]
        %v306 = vld [vmem:[%s1 + $0x8] sm:$0xf]
        %v307 = vld [vmem:[%s1 + $0xc] sm:$0xf]
        %v308 = vld [vmem:[%s1 + $0x10] sm:$0xf]
        %v309 = vld [vmem:[%s1 + $0x14] sm:$0xf]
        %v310 = vld [vmem:[%s1 + $0x18] sm:$0xf]
        %v311 = vld [vmem:[%s1 + $0x1c] sm:$0xf]
        %v312 = vld [vmem:[%s1 + $0x20] sm:$0xf]
        %v313 = vld [vmem:[%s1 + $0x24] sm:$0xf]
        %v314 = vld [vmem:[%s2] sm:$0x1]
        %v316 = vperm.slane %v314, 0
        %v328 = vunpack.c.l.b16 %v304
        %v329 = vunpack.c.l.b16 %v305
        %v330 = vunpack.c.l.b16 %v306
        %v331 = vunpack.c.l.b16 %v307
        %v332 = vunpack.c.l.b16 %v308
        %v333 = vunpack.c.l.b16 %v309
        %v334 = vunpack.c.l.b16 %v310
        %v335 = vunpack.c.l.b16 %v311
        %v336 = vunpack.c.l.b16 %v312
        %v337 = vunpack.c.l.b16 %v313
        %v338 = vpack.c.b16 %v329, %v328
        %v339 = vpack.c.b16 %v331, %v330
        %v340 = vpack.c.b16 %v333, %v332
        %v341 = vpack.c.b16 %v335, %v334
        %v342 = vpack.c.b16 %v337, %v336
        %vm348 = vcmask 654336
        %v350 = vsel %vm348, %v296, 0
        %v353 = vsel %vm348, %v297, 0
        %v356 = vsel %vm348, %v298, 0
        %v359 = vsel %vm348, %v299, 0
        %v362 = vsel %vm348, %v300, 0
        %v365 = vsel %vm348, %v301, 0
        %v368 = vsel %vm348, %v302, 0
        %v371 = vsel %vm348, %v303, 0
        %373 = vmatpush.bf16.msra.mxu0 0
        %374 = vmatpush.bf16.msra.mxu0 0
        %375 = vmatpush.bf16.msra.mxu0 0
        %376 = vmatpush.bf16.msra.mxu0 %v342
        %377 = vmatpush.bf16.msra.mxu0 %v341
        %378 = vmatpush.bf16.msra.mxu0 %v340
        %379 = vmatpush.bf16.msra.mxu0 %v339
        %380 = vmatpush.bf16.msra.mxu0 %v338
        %381 = vmatmul.bf16.gmra.mxu0 %v350
        %v382 = vpop.f32.mrf.mxu0
        %v383 = vadd.f32 %v316, %v382
        %v384 = vpop.f32.mrf.mxu0
        %v385 = vadd.f32 %v316, %v384
        %386 = vmatmul.bf16.gmra.mxu0 %v353
        %v387 = vpop.f32.mrf.mxu0
        %v388 = vadd.f32 %v316, %v387
        %v389 = vpop.f32.mrf.mxu0
        %v390 = vadd.f32 %v316, %v389
        %391 = vmatmul.bf16.gmra.mxu0 %v356
        %v392 = vpop.f32.mrf.mxu0
        %v393 = vadd.f32 %v316, %v392
        %v394 = vpop.f32.mrf.mxu0
        %v395 = vadd.f32 %v316, %v394
        %396 = vmatmul.bf16.gmra.mxu0 %v359
        %v397 = vpop.f32.mrf.mxu0
        %v398 = vadd.f32 %v316, %v397
        %v399 = vpop.f32.mrf.mxu0
        %v400 = vadd.f32 %v316, %v399
        %401 = vmatmul.bf16.gmra.mxu0 %v362
        %v402 = vpop.f32.mrf.mxu0
        %v403 = vadd.f32 %v316, %v402
        %v404 = vpop.f32.mrf.mxu0
        %v405 = vadd.f32 %v316, %v404
        %406 = vmatmul.bf16.gmra.mxu0 %v365
        %v407 = vpop.f32.mrf.mxu0
        %v408 = vadd.f32 %v316, %v407
        %v409 = vpop.f32.mrf.mxu0
        %v410 = vadd.f32 %v316, %v409
        %411 = vmatmul.bf16.gmra.mxu0 %v368
        %v412 = vpop.f32.mrf.mxu0
        %v413 = vadd.f32 %v316, %v412
        %v414 = vpop.f32.mrf.mxu0
        %v415 = vadd.f32 %v316, %v414
        %416 = vmatmul.bf16.gmra.mxu0 %v371
        %v417 = vpop.f32.mrf.mxu0
        %v418 = vadd.f32 %v316, %v417
        %v419 = vpop.f32.mrf.mxu0
        %v420 = vadd.f32 %v316, %v419
        %421 = vdwg.mxu0
        %v422 = vmax.f32 %v383, 0.0
        %v423 = vmax.f32 %v385, 0.0
        %v424 = vmax.f32 %v388, 0.0
        %v425 = vmax.f32 %v390, 0.0
        %v426 = vmax.f32 %v393, 0.0
        %v427 = vmax.f32 %v395, 0.0
        %v428 = vmax.f32 %v398, 0.0
        %v429 = vmax.f32 %v400, 0.0
        %v430 = vmax.f32 %v403, 0.0
        %v431 = vmax.f32 %v405, 0.0
        %v432 = vmax.f32 %v408, 0.0
        %v433 = vmax.f32 %v410, 0.0
        %v434 = vmax.f32 %v413, 0.0
        %v435 = vmax.f32 %v415, 0.0
        %v436 = vmax.f32 %v418, 0.0
        %v437 = vmax.f32 %v420, 0.0
        %v438 = vpack.c.bf16 %v423, %v422
        %v439 = vpack.c.bf16 %v425, %v424
        %v440 = vpack.c.bf16 %v427, %v426
        %v441 = vpack.c.bf16 %v429, %v428
        %v442 = vpack.c.bf16 %v431, %v430
        %v443 = vpack.c.bf16 %v433, %v432
        %v444 = vpack.c.bf16 %v435, %v434
        %v445 = vpack.c.bf16 %v437, %v436
        %v446 = vld [vmem:[%s3] sm:$0xf]
        %v447 = vld [vmem:[%s3 + $0x4] sm:$0xf]
        %v448 = vld [vmem:[%s3 + $0x8] sm:$0xf]
        %v449 = vld [vmem:[%s3 + $0xc] sm:$0xf]
        %v450 = vld [vmem:[%s3 + $0x10] sm:$0xf]
        %v451 = vld [vmem:[%s3 + $0x14] sm:$0xf]
        %v452 = vld [vmem:[%s3 + $0x18] sm:$0xf]
        %v453 = vld [vmem:[%s3 + $0x1c] sm:$0xf]
        %v454 = vld [vmem:[%s3 + $0x20] sm:$0xf]
        %v455 = vld [vmem:[%s3 + $0x24] sm:$0xf]
        %v456 = vld [vmem:[%s3 + $0x28] sm:$0xf]
        %v457 = vld [vmem:[%s3 + $0x2c] sm:$0xf]
        %v458 = vld [vmem:[%s3 + $0x30] sm:$0xf]
        %v459 = vld [vmem:[%s3 + $0x34] sm:$0xf]
        %v460 = vld [vmem:[%s3 + $0x38] sm:$0xf]
        %v461 = vld [vmem:[%s3 + $0x3c] sm:$0xf]
        %v462 = vld [vmem:[%s4] sm:$0x1]
        %v464 = vperm.slane %v462, 0
        %v482 = vunpack.c.l.b16 %v446
        %v483 = vunpack.c.l.b16 %v447
        %v484 = vunpack.c.l.b16 %v448
        %v485 = vunpack.c.l.b16 %v449
        %v486 = vunpack.c.l.b16 %v450
        %v487 = vunpack.c.l.b16 %v451
        %v488 = vunpack.c.l.b16 %v452
        %v489 = vunpack.c.l.b16 %v453
        %v490 = vunpack.c.l.b16 %v454
        %v491 = vunpack.c.l.b16 %v455
        %v492 = vunpack.c.l.b16 %v456
        %v493 = vunpack.c.l.b16 %v457
        %v494 = vunpack.c.l.b16 %v458
        %v495 = vunpack.c.l.b16 %v459
        %v496 = vunpack.c.l.b16 %v460
        %v497 = vunpack.c.l.b16 %v461
        %v498 = vpack.c.b16 %v483, %v482
        %v499 = vpack.c.b16 %v485, %v484
        %v500 = vpack.c.b16 %v487, %v486
        %v501 = vpack.c.b16 %v489, %v488
        %v502 = vpack.c.b16 %v491, %v490
        %v503 = vpack.c.b16 %v493, %v492
        %v504 = vpack.c.b16 %v495, %v494
        %v505 = vpack.c.b16 %v497, %v496
        %514 = vmatpush.bf16.msra.mxu0 %v505
        %515 = vmatpush.bf16.msra.mxu0 %v504
        %516 = vmatpush.bf16.msra.mxu0 %v503
        %517 = vmatpush.bf16.msra.mxu0 %v502
        %518 = vmatpush.bf16.msra.mxu0 %v501
        %519 = vmatpush.bf16.msra.mxu0 %v500
        %520 = vmatpush.bf16.msra.mxu0 %v499
        %521 = vmatpush.bf16.msra.mxu0 %v498
        %522 = vmatmul.bf16.gmra.mxu0 %v438
        %v523 = vpop.f32.mrf.mxu0
        %v524 = vadd.f32 %v464, %v523
        %v525 = vpop.f32.mrf.mxu0
        %v526 = vadd.f32 %v464, %v525
        %527 = vmatmul.bf16.gmra.mxu0 %v439
        %v528 = vpop.f32.mrf.mxu0
        %v529 = vadd.f32 %v464, %v528
        %v530 = vpop.f32.mrf.mxu0
        %v531 = vadd.f32 %v464, %v530
        %532 = vmatmul.bf16.gmra.mxu0 %v440
        %v533 = vpop.f32.mrf.mxu0
        %v534 = vadd.f32 %v464, %v533
        %v535 = vpop.f32.mrf.mxu0
        %v536 = vadd.f32 %v464, %v535
        %537 = vmatmul.bf16.gmra.mxu0 %v441
        %v538 = vpop.f32.mrf.mxu0
        %v539 = vadd.f32 %v464, %v538
        %v540 = vpop.f32.mrf.mxu0
        %v541 = vadd.f32 %v464, %v540
        %542 = vmatmul.bf16.gmra.mxu0 %v442
        %v543 = vpop.f32.mrf.mxu0
        %v544 = vadd.f32 %v464, %v543
        %v545 = vpop.f32.mrf.mxu0
        %v546 = vadd.f32 %v464, %v545
        %547 = vmatmul.bf16.gmra.mxu0 %v443
        %v548 = vpop.f32.mrf.mxu0
        %v549 = vadd.f32 %v464, %v548
        %v550 = vpop.f32.mrf.mxu0
        %v551 = vadd.f32 %v464, %v550
        %552 = vmatmul.bf16.gmra.mxu0 %v444
        %v553 = vpop.f32.mrf.mxu0
        %v554 = vadd.f32 %v464, %v553
        %v555 = vpop.f32.mrf.mxu0
        %v556 = vadd.f32 %v464, %v555
        %557 = vmatmul.bf16.gmra.mxu0 %v445
        %v558 = vpop.f32.mrf.mxu0
        %v559 = vadd.f32 %v464, %v558
        %v560 = vpop.f32.mrf.mxu0
        %v561 = vadd.f32 %v464, %v560
        %562 = vdwg.mxu0
        %v563 = vmax.f32 %v524, 0.0
        %v564 = vmax.f32 %v526, 0.0
        %v565 = vmax.f32 %v529, 0.0
        %v566 = vmax.f32 %v531, 0.0
        %v567 = vmax.f32 %v534, 0.0
        %v568 = vmax.f32 %v536, 0.0
        %v569 = vmax.f32 %v539, 0.0
        %v570 = vmax.f32 %v541, 0.0
        %v571 = vmax.f32 %v544, 0.0
        %v572 = vmax.f32 %v546, 0.0
        %v573 = vmax.f32 %v549, 0.0
        %v574 = vmax.f32 %v551, 0.0
        %v575 = vmax.f32 %v554, 0.0
        %v576 = vmax.f32 %v556, 0.0
        %v577 = vmax.f32 %v559, 0.0
        %v578 = vmax.f32 %v561, 0.0
        %v579 = vld [vmem:[%s5] sm:$0x1]
        %v581 = vperm.slane %v579, 0
        %v583 = vadd.f32 %v563, %v581
        %v584 = vadd.f32 %v564, %v581
        %v585 = vadd.f32 %v565, %v581
        %v586 = vadd.f32 %v566, %v581
        %v587 = vadd.f32 %v567, %v581
        %v588 = vadd.f32 %v568, %v581
        %v589 = vadd.f32 %v569, %v581
        %v590 = vadd.f32 %v570, %v581
        %v591 = vadd.f32 %v571, %v581
        %v592 = vadd.f32 %v572, %v581
        %v593 = vadd.f32 %v573, %v581
        %v594 = vadd.f32 %v574, %v581
        %v595 = vadd.f32 %v575, %v581
        %v596 = vadd.f32 %v576, %v581
        %v597 = vadd.f32 %v577, %v581
        %v598 = vadd.f32 %v578, %v581
        %599 = vmax.xlane.f32.xlu0 %v583
        %v600 = vpop.xlane.xlu0 %599
        %601 = vmax.xlane.f32.xlu0 %v584
        %v602 = vpop.xlane.xlu0 %601
        %603 = vmax.xlane.f32.xlu0 %v585
        %v604 = vpop.xlane.xlu0 %603
        %605 = vmax.xlane.f32.xlu0 %v586
        %v606 = vpop.xlane.xlu0 %605
        %607 = vmax.xlane.f32.xlu0 %v587
        %v608 = vpop.xlane.xlu0 %607
        %609 = vmax.xlane.f32.xlu0 %v588
        %v610 = vpop.xlane.xlu0 %609
        %611 = vmax.xlane.f32.xlu0 %v589
        %v612 = vpop.xlane.xlu0 %611
        %613 = vmax.xlane.f32.xlu0 %v590
        %v614 = vpop.xlane.xlu0 %613
        %615 = vmax.xlane.f32.xlu0 %v591
        %v616 = vpop.xlane.xlu0 %615
        %617 = vmax.xlane.f32.xlu0 %v592
        %v618 = vpop.xlane.xlu0 %617
        %619 = vmax.xlane.f32.xlu0 %v593
        %v620 = vpop.xlane.xlu0 %619
        %621 = vmax.xlane.f32.xlu0 %v594
        %v622 = vpop.xlane.xlu0 %621
        %623 = vmax.xlane.f32.xlu0 %v595
        %v624 = vpop.xlane.xlu0 %623
        %625 = vmax.xlane.f32.xlu0 %v596
        %v626 = vpop.xlane.xlu0 %625
        %627 = vmax.xlane.f32.xlu0 %v597
        %v628 = vpop.xlane.xlu0 %627
        %629 = vmax.xlane.f32.xlu0 %v598
        %v630 = vpop.xlane.xlu0 %629
        %v631 = vsub.f32 %v583, %v600
        %v632 = vsub.f32 %v584, %v602
        %v633 = vsub.f32 %v585, %v604
        %v634 = vsub.f32 %v586, %v606
        %v635 = vsub.f32 %v587, %v608
        %v636 = vsub.f32 %v588, %v610
        %v637 = vsub.f32 %v589, %v612
        %v638 = vsub.f32 %v590, %v614
        %v639 = vsub.f32 %v591, %v616
        %v640 = vsub.f32 %v592, %v618
        %v641 = vsub.f32 %v593, %v620
        %v642 = vsub.f32 %v594, %v622
        %v643 = vsub.f32 %v595, %v624
        %v644 = vsub.f32 %v596, %v626
        %v645 = vsub.f32 %v597, %v628
        %v646 = vsub.f32 %v598, %v630
        %v647 = vmul.f32 %v631, 1.442695
        %v648 = vpow.pop %v647
        %v649 = vmul.f32 %v632, 1.442695
        %v650 = vpow.pop %v649
        %v651 = vmul.f32 %v633, 1.442695
        %v652 = vpow.pop %v651
        %v653 = vmul.f32 %v634, 1.442695
        %v654 = vpow.pop %v653
        %v655 = vmul.f32 %v635, 1.442695
        %v656 = vpow.pop %v655
        %v657 = vmul.f32 %v636, 1.442695
        %v658 = vpow.pop %v657
        %v659 = vmul.f32 %v637, 1.442695
        %v660 = vpow.pop %v659
        %v661 = vmul.f32 %v638, 1.442695
        %v662 = vpow.pop %v661
        %v663 = vmul.f32 %v639, 1.442695
        %v664 = vpow.pop %v663
        %v665 = vmul.f32 %v640, 1.442695
        %v666 = vpow.pop %v665
        %v667 = vmul.f32 %v641, 1.442695
        %v668 = vpow.pop %v667
        %v669 = vmul.f32 %v642, 1.442695
        %v670 = vpow.pop %v669
        %v671 = vmul.f32 %v643, 1.442695
        %v672 = vpow.pop %v671
        %v673 = vmul.f32 %v644, 1.442695
        %v674 = vpow.pop %v673
        %v675 = vmul.f32 %v645, 1.442695
        %v676 = vpow.pop %v675
        %v677 = vmul.f32 %v646, 1.442695
        %v678 = vpow.pop %v677
        %679 = vadd.xlane.f32.xlu0 %v648
        %v680 = vpop.xlane.xlu0 %679
        %681 = vadd.xlane.f32.xlu0 %v650
        %v682 = vpop.xlane.xlu0 %681
        %683 = vadd.xlane.f32.xlu0 %v652
        %v684 = vpop.xlane.xlu0 %683
        %685 = vadd.xlane.f32.xlu0 %v654
        %v686 = vpop.xlane.xlu0 %685
        %687 = vadd.xlane.f32.xlu0 %v656
        %v688 = vpop.xlane.xlu0 %687
        %689 = vadd.xlane.f32.xlu0 %v658
        %v690 = vpop.xlane.xlu0 %689
        %691 = vadd.xlane.f32.xlu0 %v660
        %v692 = vpop.xlane.xlu0 %691
        %693 = vadd.xlane.f32.xlu0 %v662
        %v694 = vpop.xlane.xlu0 %693
        %695 = vadd.xlane.f32.xlu0 %v664
        %v696 = vpop.xlane.xlu0 %695
        %697 = vadd.xlane.f32.xlu0 %v666
        %v698 = vpop.xlane.xlu0 %697
        %699 = vadd.xlane.f32.xlu0 %v668
        %v700 = vpop.xlane.xlu0 %699
        %701 = vadd.xlane.f32.xlu0 %v670
        %v702 = vpop.xlane.xlu0 %701
        %703 = vadd.xlane.f32.xlu0 %v672
        %v704 = vpop.xlane.xlu0 %703
        %705 = vadd.xlane.f32.xlu0 %v674
        %v706 = vpop.xlane.xlu0 %705
        %707 = vadd.xlane.f32.xlu0 %v676
        %v708 = vpop.xlane.xlu0 %707
        %709 = vadd.xlane.f32.xlu0 %v678
        %v710 = vpop.xlane.xlu0 %709
        %v711 = vrcp.pop %v680
        %v712 = vrcp.pop %v682
        %v713 = vrcp.pop %v684
        %v714 = vrcp.pop %v686
        %v715 = vrcp.pop %v688
        %v716 = vrcp.pop %v690
        %v717 = vrcp.pop %v692
        %v718 = vrcp.pop %v694
        %v719 = vrcp.pop %v696
        %v720 = vrcp.pop %v698
        %v721 = vrcp.pop %v700
        %v722 = vrcp.pop %v702
        %v723 = vrcp.pop %v704
        %v724 = vrcp.pop %v706
        %v725 = vrcp.pop %v708
        %v726 = vrcp.pop %v710
        %v727 = vmul.f32 %v648, %v711
        %v728 = vmul.f32 %v650, %v712
        %v729 = vmul.f32 %v652, %v713
        %v730 = vmul.f32 %v654, %v714
        %v731 = vmul.f32 %v656, %v715
        %v732 = vmul.f32 %v658, %v716
        %v733 = vmul.f32 %v660, %v717
        %v734 = vmul.f32 %v662, %v718
        %v735 = vmul.f32 %v664, %v719
        %v736 = vmul.f32 %v666, %v720
        %v737 = vmul.f32 %v668, %v721
        %v738 = vmul.f32 %v670, %v722
        %v739 = vmul.f32 %v672, %v723
        %v740 = vmul.f32 %v674, %v724
        %v741 = vmul.f32 %v676, %v725
        %v742 = vmul.f32 %v678, %v726
        %v743 = vld [vmem:[%s6] sm:$0xf]
        %v744 = vpack.c.bf16 %v728, %v727
        %v745 = vpack.c.bf16 %v730, %v729
        %v746 = vpack.c.bf16 %v732, %v731
        %v747 = vpack.c.bf16 %v734, %v733
        %v748 = vpack.c.bf16 %v736, %v735
        %v749 = vpack.c.bf16 %v738, %v737
        %v750 = vpack.c.bf16 %v740, %v739
        %v751 = vpack.c.bf16 %v742, %v741
        %752 = vmatpush.bf16.xpose.msra.mxu0 %v751
        %753 = vmatpush.bf16.xpose.msra.mxu0 %v750
        %754 = vmatpush.bf16.xpose.msra.mxu0 %v749
        %755 = vmatpush.bf16.xpose.msra.mxu0 %v748
        %756 = vmatpush.bf16.xpose.msra.mxu0 %v747
        %757 = vmatpush.bf16.xpose.msra.mxu0 %v746
        %758 = vmatpush.bf16.xpose.msra.mxu0 %v745
        %759 = vmatpush.bf16.xpose.msra.mxu0 %v744
        %760 = vmatmul.bf16.gmra.mxu0 %v743
        %v761 = vpop.f32.mrf.mxu0
        %v762 = vadd.f32 0.0, %v761
        %v763 = vpop.f32.mrf.mxu0
        %764 = vdwg.mxu0
        %765 = vst [vmem:[%s272] sm:$0xff] %v762
        %s766 = sand.u32 %s181, 1
        %s767 = scalar_lea.sflag [#allocation3], %s766
        %s768 = sand.u32 %s181, 1
        %s769 = smul.addr %s768, 8
        %s770 = scalar_lea.vmem [#allocation2], %s769
        // Predicated region
        $region49: #{tpu_custom_call.1} parent=47 // pred_check
          %p771 = pneg %p191
        $region50: #{tpu_custom_call.1} parent=47 // pred_check_branch
          %773 = sbr.rel (%p771) target = $region52
        $region51: #{tpu_custom_call.1} parent=47 // pred_region
          %775 = vsyncadd %s767, 0
          %s776 = smul.addr %s21, 8
          %s777 = scalar_lea.hbm %s7, %s776
          %s779 = sshll.u32 %s770, 4
          %s780 = int_to_ptr.vmem [resolvable:$true] %s779
          %s781 = sshll.u32 %s777, 4
          %s782 = int_to_ptr.hbm [resolvable:$true] %s781
          %784 = dma.vmem_to_hbm [thread:$0]  %s780, 128, %s782, %s767
        $region52: #{tpu_custom_call.1} parent=47 // pred_fallthru
          _
      $region48: #{tpu_custom_call.1} parent=5 // pred_fallthru
        _
      %p785 = scmp.le.s32.totalorder 2, %s16
      // Predicated region
      $region53: #{tpu_custom_call.1} parent=5 // pred_check
        %p786 = pneg %p785
      $region54: #{tpu_custom_call.1} parent=5 // pred_check_branch
        %788 = sbr.rel (%p786) target = $region56
      $region55: #{tpu_custom_call.1} parent=5 // pred_region
        %s789 = ssub.s32 %s16, 2
        // Predicated region
        $region57: #{tpu_custom_call.1} parent=55 // pred_check
          %p790 = pneg %p197
        $region58: #{tpu_custom_call.1} parent=55 // pred_check_branch
          %792 = sbr.rel (%p790) target = $region60
        $region59: #{tpu_custom_call.1} parent=55 // pred_region
          %s793 = sand.u32 %s182, 1
          %s794 = scalar_lea.sflag [#allocation3], %s793
          %s795 = sand.u32 %s182, 1
          %s796 = smul.addr %s795, 8
          %s797 = scalar_lea.vmem [#allocation2], %s796
          %799 = dma.done %s794, 128
        $region60: #{tpu_custom_call.1} parent=55 // pred_fallthru
          _
      $region56: #{tpu_custom_call.1} parent=5 // pred_fallthru
        _
    $region6: #{tpu_custom_call.1} parent=1 // loop_footer
      %s20 = sadd.s32 1, %s16
    $region7: #{tpu_custom_call.1} parent=1 // loop_footer_branch
      %15 = sbr.rel target = $region3
    $region8: #{tpu_custom_call.1} parent=1 // loop_exit
      _
    %800 = vsyncpa [#allocation3], 1
    %s801 = scalar_lea.sflag [#allocation3], 1
    %802 = vsyncpa %s801, 1

</llo_original>
